<compile_context>
chip_gen: v5e
topology: v5e:2x2
jax: 0.10.0
libtpu: 0.0.40
codegen_flags: <defaults>
</compile_context>

<pallas_src>
import functools
from typing import NamedTuple, Optional

import jax
import jax.numpy as jnp
from jax.experimental import pallas as pl
from jax.experimental.pallas import tpu as pltpu


def _round_up(x, m):
    return (x + m - 1) // m * m


def _sublane_pack(dtype) -> int:
    """Rows per packed sublane tile: 8 for f32, 16 for bf16, 32 for int8/fp8."""
    return max(8, 32 // jnp.dtype(dtype).itemsize)


def _vmem_budget_bytes() -> int:
    """~85% of physical per-core VMEM; falls back to the 64 MiB v7x floor."""
    cap = 64 * 1024 * 1024
    try:
        info = pltpu.get_tpu_info()
        cap = int(getattr(info, "vmem_capacity_bytes", cap)) or cap
    except Exception:
        pass
    return int(cap * 0.85)


class FalconH1MLPWeights(NamedTuple):
    """Weights prepared ONCE at model-load time (not on the per-call path)."""
    wgu: jax.Array   # [H, n_slabs * 2*ti], slab k = [gate_cols*gm | up_cols]
    wd: jax.Array    # [I_pad, H], already scaled by down_multiplier
    ti: int          # intermediate tile baked into the wgu layout


def prepare_falcon_h1_mlp_weights(w_gate_up, w_down, *, gate_multiplier,
                                  down_multiplier, inter_tile=512,
                                  weight_dtype: Optional[jnp.dtype] = None):
    """One-time weight prep: split/interleave merged gate|up, fold multipliers,
    pad the intermediate dim to a multiple of ti, optional dtype cast.
    """
    H, two_I = w_gate_up.shape
    I = two_I // 2
    assert w_down.shape == (I, H)
    assert inter_tile >= 128 and inter_tile % 128 == 0

    wdtype = jnp.dtype(weight_dtype) if weight_dtype is not None else w_gate_up.dtype
    wbytes = jnp.dtype(wdtype).itemsize

    # Keep the double-buffered weight slabs (gate|up [H,2ti] + down [ti,H]) under
    # roughly half of the device VMEM budget; the rest goes to x/out/acc tiles.
    budget = _vmem_budget_bytes()
    max_ti = max(128, ((budget // 2) // (6 * H * wbytes)) // 128 * 128)
    ti = min(inter_tile, _round_up(I, 128), max_ti)
    I_pad = _round_up(I, ti)

    # Fold the mlp multipliers into the weights (free: done once at init).
    w_gate = (w_gate_up[:, :I] * gate_multiplier).astype(wdtype)
    w_up = w_gate_up[:, I:].astype(wdtype)
    wd = (w_down * down_multiplier).astype(wdtype)

    if I_pad != I:  # one-time pad, not per forward
        w_gate = jnp.pad(w_gate, ((0, 0), (0, I_pad - I)))
        w_up = jnp.pad(w_up, ((0, 0), (0, I_pad - I)))
        wd = jnp.pad(wd, ((0, I_pad - I), (0, 0)))

    n = I_pad // ti
    wgu = jnp.concatenate(
        [w_gate.reshape(H, n, ti), w_up.reshape(H, n, ti)], axis=2
    ).reshape(H, n * 2 * ti)
    return FalconH1MLPWeights(wgu=wgu, wd=wd, ti=ti)


def _mlp_kernel(x_ref, wgu_ref, wd_ref, o_ref, acc_ref, *, ti):
    k = pl.program_id(1)

    @pl.when(k == 0)
    def _():
        acc_ref[...] = jnp.zeros_like(acc_ref)

    x = x_ref[...]                                              # [tm, H] native dtype

    # Single MXU pass for gate|up slab (gate_multiplier already folded in).
    gu = jnp.dot(x, wgu_ref[...], preferred_element_type=jnp.float32)  # [tm, 2*ti]
    gate = gu[:, :ti]                                           # lane-aligned split (free)
    up = gu[:, ti:]

    # SiluAndMul: silu(gate) * up (sigmoid runs on the EUP).
    h = gate * jax.nn.sigmoid(gate) * up                        # [tm, ti] f32

    # Partial down projection for this slab (down_multiplier folded into wd).
    acc_ref[...] += jnp.dot(h.astype(wd_ref.dtype), wd_ref[...],
                            preferred_element_type=jnp.float32)

    @pl.when(k == pl.num_programs(1) - 1)
    def _():
        o_ref[...] = acc_ref[...].astype(o_ref.dtype)


def falcon_h1_mlp(x, weights: FalconH1MLPWeights, *, token_tile=512):
    """x: [T, H]; weights: output of prepare_falcon_h1_mlp_weights -> [T, H]."""
    T, H = x.shape
    wgu, wd, ti = weights
    I_pad = wd.shape[0]
    assert wgu.shape == (H, 2 * I_pad) and I_pad % ti == 0

    xb = jnp.dtype(x.dtype).itemsize
    wb = jnp.dtype(wd.dtype).itemsize
    pack = _sublane_pack(x.dtype)

    tm = min(_round_up(token_tile, pack), _round_up(T, pack))

    # Shrink the token tile until the double-buffered working set fits VMEM.
    budget = _vmem_budget_bytes()

    def working_set(tm_):
        return (2 * tm_ * H * xb            # x tile (double-buffered)
                + 2 * H * 2 * ti * wb       # gate|up weight slab
                + 2 * ti * H * wb           # down weight slab
                + 2 * tm_ * H * xb          # output tile
                + tm_ * H * 4)              # f32 accumulator

    while working_set(tm) > budget and tm > pack:
        tm = max(pack, _round_up(tm // 2, pack))

    T_pad = _round_up(T, tm)
    if T_pad != T:                           # cheap activation-only pad
        x = jnp.pad(x, ((0, T_pad - T), (0, 0)))

    grid = (T_pad // tm, I_pad // ti)

    out = pl.pallas_call(
        functools.partial(_mlp_kernel, ti=ti),
        out_shape=jax.ShapeDtypeStruct((T_pad, H), x.dtype),
        grid_spec=pltpu.PrefetchScalarGridSpec(
            num_scalar_prefetch=0,
            grid=grid,
            in_specs=[
                pl.BlockSpec((tm, H), lambda i, k: (i, 0)),       # x tile (resident over k)
                pl.BlockSpec((H, 2 * ti), lambda i, k: (0, k)),   # interleaved gate|up slab
                pl.BlockSpec((ti, H), lambda i, k: (k, 0)),       # down slab
            ],
            out_specs=pl.BlockSpec((tm, H), lambda i, k: (i, 0)),
            scratch_shapes=[pltpu.VMEM((tm, H), jnp.float32)],    # f32 accumulator
        ),
        compiler_params=pltpu.CompilerParams(
            dimension_semantics=("parallel", "arbitrary"),
            vmem_limit_bytes=budget,
        ),
    )(x, wgu, wd)

    if T_pad != T:
        out = out[:T]
    return out


def falcon_h1_mlp_ref(x, w_gate_up, w_down, *, gate_multiplier, down_multiplier):
    I = w_gate_up.shape[1] // 2
    gu = x.astype(jnp.float32) @ w_gate_up.astype(jnp.float32)
    gate = gu[:, :I] * gate_multiplier
    up = gu[:, I:]
    h = jax.nn.silu(gate) * up
    out = (h @ w_down.astype(jnp.float32)) * down_multiplier
    return out.astype(x.dtype)


if __name__ == "__main__":
    # Small synthetic config (tp_size = 1, bias = False, hidden_act = 'silu').
    T = 20           # token count NOT a multiple of 8 -> exercises activation padding
    H = 128          # config.hidden_size
    I = 256          # config.intermediate_size
    gate_multiplier = 1.25   # config.mlp_multipliers[0]
    down_multiplier = 0.5    # config.mlp_multipliers[1]

    key = jax.random.PRNGKey(0)
    kx, kg, kd = jax.random.split(key, 3)
    x = jax.random.normal(kx, (T, H), dtype=jnp.float32)
    w_gate_up = jax.random.normal(kg, (H, 2 * I), dtype=jnp.float32) * 0.05
    w_down = jax.random.normal(kd, (I, H), dtype=jnp.float32) * 0.05

    # One-time weight prep (would live at model-load time in production).
    # inter_tile=128 -> two reduction steps, exercising the accumulator path.
    weights = prepare_falcon_h1_mlp_weights(
        w_gate_up, w_down,
        gate_multiplier=gate_multiplier,
        down_multiplier=down_multiplier,
        inter_tile=128,
    )

    out = falcon_h1_mlp(x, weights)
    out = jax.block_until_ready(out)

    ref = falcon_h1_mlp_ref(x, w_gate_up, w_down,
                            gate_multiplier=gate_multiplier,
                            down_multiplier=down_multiplier)
    assert out.shape == (T, H)
    assert jnp.allclose(out, ref, atol=1e-4, rtol=1e-4), "mismatch vs reference"
    print("KERNEL_OK")
</pallas_src>

<mosaic_0001>
module attributes {stable_mosaic.version = 11 : i64} {
  func.func @_mlp_kernel(%arg0: i32, %arg1: i32, %arg2: memref<24x128xf32, #tpu.memory_space<vmem>>, %arg3: memref<128x256xf32, #tpu.memory_space<vmem>>, %arg4: memref<128x128xf32, #tpu.memory_space<vmem>>, %arg5: memref<24x128xf32, #tpu.memory_space<vmem>>, %arg6: memref<24x128xf32, #tpu.memory_space<vmem>>) attributes {dimension_semantics = [#tpu.dimension_semantics<parallel>, #tpu.dimension_semantics<arbitrary>], iteration_bounds = array<i64: 1, 2>, scalar_prefetch = 0 : i64, scratch_operands = 1 : i64, tpu.core_type = #tpu.core_type<tc>, window_params = [{transform_indices = @transform_0, window_bounds = array<i64: 24, 128>}, {transform_indices = @transform_1, window_bounds = array<i64: 128, 256>}, {transform_indices = @transform_2, window_bounds = array<i64: 128, 128>}, {transform_indices = @transform_3, window_bounds = array<i64: 24, 128>}]} {
    %c0_i32 = arith.constant 0 : i32
    %0 = arith.cmpi eq, %arg1, %c0_i32 : i32
    %1 = arith.extui %0 : i1 to i32
    %c0_i32_0 = arith.constant 0 : i32
    %2 = arith.cmpi ne, %1, %c0_i32_0 : i32
    scf.if %2 {
      %cst_13 = arith.constant 0.000000e+00 : f32
      %23 = vector.broadcast %cst_13 : f32 to vector<24x128xf32>
      %c0_14 = arith.constant 0 : index
      %c0_15 = arith.constant 0 : index
      %24 = vector.load %arg6[%c0_14, %c0_15] : memref<24x128xf32, #tpu.memory_space<vmem>>, vector<24x128xf32>
      tpu.vector_store %arg6[%c0_14, %c0_15], %23 {strides = array<i32>} : memref<24x128xf32, #tpu.memory_space<vmem>>, vector<24x128xf32>,
    } else {
    }
    %c0 = arith.constant 0 : index
    %c0_1 = arith.constant 0 : index
    %3 = vector.load %arg2[%c0, %c0_1] : memref<24x128xf32, #tpu.memory_space<vmem>>, vector<24x128xf32>
    %c0_2 = arith.constant 0 : index
    %c0_3 = arith.constant 0 : index
    %4 = vector.load %arg3[%c0_2, %c0_3] : memref<128x256xf32, #tpu.memory_space<vmem>>, vector<128x256xf32>
    %cst = arith.constant dense<0.000000e+00> : vector<24x256xf32>
    %5 = tpu.matmul %3, %4, %cst {dimension_numbers = #tpu.dot_dimension_numbers<[1], [0], [0], [1], [0, 0, 1, 1], [], []>} : vector<24x128xf32>, vector<128x256xf32>, vector<24x256xf32> -> vector<24x256xf32>
    %6 = vector.extract_strided_slice %5 {offsets = [0, 0], sizes = [24, 128], strides = [1, 1]} : vector<24x256xf32> to vector<24x128xf32>
    %7 = vector.extract_strided_slice %5 {offsets = [0, 128], sizes = [24, 128], strides = [1, 1]} : vector<24x256xf32> to vector<24x128xf32>
    %8 = arith.negf %6 : vector<24x128xf32>
    %9 = math.exp %8 : vector<24x128xf32>
    %cst_4 = arith.constant 1.000000e+00 : f32
    %10 = vector.broadcast %cst_4 : f32 to vector<24x128xf32>
    %11 = arith.addf %10, %9 : vector<24x128xf32>
    %12 = arith.divf %10, %11 : vector<24x128xf32>
    %13 = arith.mulf %6, %12 : vector<24x128xf32>
    %14 = arith.mulf %13, %7 : vector<24x128xf32>
    %c0_5 = arith.constant 0 : index
    %c0_6 = arith.constant 0 : index
    %15 = vector.load %arg6[%c0_5, %c0_6] : memref<24x128xf32, #tpu.memory_space<vmem>>, vector<24x128xf32>
    %c0_7 = arith.constant 0 : index
    %c0_8 = arith.constant 0 : index
    %16 = vector.load %arg4[%c0_7, %c0_8] : memref<128x128xf32, #tpu.memory_space<vmem>>, vector<128x128xf32>
    %cst_9 = arith.constant dense<0.000000e+00> : vector<24x128xf32>
    %17 = tpu.matmul %14, %16, %cst_9 {dimension_numbers = #tpu.dot_dimension_numbers<[1], [0], [0], [1], [0, 0, 1, 1], [], []>} : vector<24x128xf32>, vector<128x128xf32>, vector<24x128xf32> -> vector<24x128xf32>
    %18 = arith.addf %15, %17 : vector<24x128xf32>
    %c0_10 = arith.constant 0 : index
    %c0_11 = arith.constant 0 : index
    %19 = vector.load %arg6[%c0_10, %c0_11] : memref<24x128xf32, #tpu.memory_space<vmem>>, vector<24x128xf32>
    tpu.vector_store %arg6[%c0_10, %c0_11], %18 {strides = array<i32>} : memref<24x128xf32, #tpu.memory_space<vmem>>, vector<24x128xf32>,
    %c1_i32 = arith.constant 1 : i32
    %20 = arith.cmpi eq, %arg1, %c1_i32 : i32
    %21 = arith.extui %20 : i1 to i32
    %c0_i32_12 = arith.constant 0 : i32
    %22 = arith.cmpi ne, %21, %c0_i32_12 : i32
    scf.if %22 {
      %c0_13 = arith.constant 0 : index
      %c0_14 = arith.constant 0 : index
      %23 = vector.load %arg6[%c0_13, %c0_14] : memref<24x128xf32, #tpu.memory_space<vmem>>, vector<24x128xf32>
      %c0_15 = arith.constant 0 : index
      %c0_16 = arith.constant 0 : index
      %24 = vector.load %arg5[%c0_15, %c0_16] : memref<24x128xf32, #tpu.memory_space<vmem>>, vector<24x128xf32>
      tpu.vector_store %arg5[%c0_15, %c0_16], %23 {strides = array<i32>} : memref<24x128xf32, #tpu.memory_space<vmem>>, vector<24x128xf32>,
    } else {
    }
    return
  }
  func.func @transform_0(%arg0: i32, %arg1: i32) -> (i32, i32) {
    %c0_i32 = arith.constant 0 : i32
    %c0_i32_0 = arith.constant 0 : i32
    return %arg0, %c0_i32 : i32, i32
  }
  func.func @transform_1(%arg0: i32, %arg1: i32) -> (i32, i32) {
    %c0_i32 = arith.constant 0 : i32
    %c0_i32_0 = arith.constant 0 : i32
    return %c0_i32, %arg1 : i32, i32
  }
  func.func @transform_2(%arg0: i32, %arg1: i32) -> (i32, i32) {
    %c0_i32 = arith.constant 0 : i32
    %c0_i32_0 = arith.constant 0 : i32
    return %arg1, %c0_i32 : i32, i32
  }
  func.func @transform_3(%arg0: i32, %arg1: i32) -> (i32, i32) {
    %c0_i32 = arith.constant 0 : i32
    %c0_i32_0 = arith.constant 0 : i32
    return %arg0, %c0_i32 : i32, i32
  }
}

</mosaic_0001>

<llo_original>
// kernel: tpu_custom_call.1
$region0: #{tpu_custom_call.1}
  #allocation0 [shape = 'u32[]', space=smem, size = 0x4, offset = 0x4, fixed_abs, tag = 'smem constant byte address 0x4 - core index']
  #allocation1 [shape = 'u32[72,128]{1,0:T(1,128)}', space=vmem, size = 0x9000, scoped, tag = 'internal scratch']
  #allocation2 [shape = 'f32[24,128]{1,0:T(8,128)}', space=vmem, size = 0x3000, scoped, tag = 'scratch operand']
  %s0 = inlined_call_operand.hbm [shape: f32[24,128], index: 0, kind: input, shape index: {}]
  %s1 = inlined_call_operand.hbm [shape: f32[128,512], index: 1, kind: input, shape index: {}]
  %s2 = inlined_call_operand.hbm [shape: f32[256,128], index: 2, kind: input, shape index: {}]
  %s3 = inlined_call_operand.hbm [shape: f32[24,128], index: 3, kind: output, shape index: {}]
  %s4 = sld [smem:[#allocation0]]
  $region65: #{tpu_custom_call.1} parent=0
    _
  %s6 = ssub.s32 1, %s4
  %s7 = scalar_select 0, %s6, %s4
  $region1: #{tpu_custom_call.1} parent=0
    #allocation3 [shape = 'u8[12288]{0}', space=vmem, size = 0x3000, scoped, tag = 'input window, operand 0, single buffered']
    #allocation4 [shape = 's32[2]{0}', space=sflag, size = 0x8, scoped, tag = 'scoped memory for tpu_custom_call.1']
    #allocation5 [shape = 's32[2]{0}', space=sflag, size = 0x8, scoped, tag = 'scoped memory for tpu_custom_call.1']
    #allocation6 [shape = 'u8[262144]{0}', space=vmem, size = 0x40000, scoped, tag = 'input window, operand 1']
    #allocation7 [shape = 's32[2]{0}', space=sflag, size = 0x8, scoped, tag = 'scoped memory for tpu_custom_call.1']
    #allocation8 [shape = 'u8[131072]{0}', space=vmem, size = 0x20000, scoped, tag = 'input window, operand 2']
    #allocation9 [shape = 'u8[12288]{0}', space=vmem, size = 0x3000, scoped, tag = 'output window, operand 0, single buffered']
    %8 = vsyncpa [#allocation4], 0
    %9 = vsyncpa [#allocation7], 0
    %s10 = scalar_lea.sflag [#allocation7], 1
    %11 = vsyncpa %s10, 0
    %12 = vsyncpa [#allocation5], 0
    loop: start=0, step=1, limit=4
    $region2: #{tpu_custom_call.1} parent=1 // loop_pre_header
      _
    $region3: #{tpu_custom_call.1} parent=1 // loop_header
      %s14 = sphi 0, %s18
      %p15 = scmp.ge.s32.totalorder %s14, 4
      %s21 = sphi 0, %s33
      %s22 = sphi 0, %s29
      %s23 = sphi 0, %s21
      %s24 = sphi 0, %s22
      %s25 = sphi 0, %s23
      %s26 = sphi 0, %s24
      %s36 = sphi 0, %s38
      %s39 = sphi 0, %s36
      %s40 = sphi 0, %s39
      %s56 = sphi 0, %s40
      %s62 = sphi 0, %s64
      %s65 = sphi 0, %s62
      %s66 = sphi 0, %s65
      %s82 = sphi 0, %s66
      %s88 = sphi 0, %s90
      %s91 = sphi 0, %s88
      %s92 = sphi 0, %s91
      %s108 = sphi 0, %s92
      %s114 = sphi 0, %s116
      %s117 = sphi 0, %s114
      %s118 = sphi 0, %s117
      %s134 = sphi 0, %s118
    $region4: #{tpu_custom_call.1} parent=1 // loop_header_branch
      %17 = sbr.rel (%p15) target = $region8
    $region5: #{tpu_custom_call.1} parent=1 // loop_body
      %s19 = ssub.s32 %s14, 1
      %s20 = ssub.s32 %s14, 2
      %s27 = sadd.s32 1, %s22
      %p28 = scmp.ge.s32.totalorder %s27, 2
      %s29 = scalar_select %p28, 0, %s27
      %s30 = sadd.s32 1, %s21
      %s31 = scalar_select %p28, %s30, %s21
      %p32 = scmp.ge.s32.totalorder %s31, 1
      %s33 = scalar_select %p32, 0, %s31
      %s34 = ssub.s32 %s21, %s33
      %p35 = scmp.eq.s32.totalorder %s34, 0
      %s37 = sadd.s32 %s36, 1
      %s38 = scalar_select %p35, %s36, %s37
      %p41 = pneg %p35
      %p42 = scmp.eq.s32.totalorder %s14, 1
      %p43 = por %p41, %p42
      %p44 = scmp.ne.s32.totalorder %s36, %s39
      %p45 = scmp.eq.s32.totalorder %s14, 0
      %p46 = por %p44, %p45
      %p47 = scmp.ne.s32.totalorder %s36, %s39
      %p48 = scmp.eq.s32.totalorder %s19, 1
      %p49 = por %p47, %p48
      %p50 = scmp.ne.s32.totalorder %s39, %s40
      %p51 = scmp.eq.s32.totalorder %s19, 0
      %p52 = por %p50, %p51
      %p53 = scmp.ne.s32.totalorder %s39, %s40
      %p54 = scmp.eq.s32.totalorder %s20, 1
      %p55 = por %p53, %p54
      %p57 = scmp.ne.s32.totalorder %s40, %s56
      %p58 = scmp.eq.s32.totalorder %s20, 0
      %p59 = por %p57, %p58
      %s60 = ssub.s32 %s22, %s29
      %p61 = scmp.eq.s32.totalorder %s60, 0
      %s63 = sadd.s32 %s62, 1
      %s64 = scalar_select %p61, %s62, %s63
      %p67 = pneg %p61
      %p68 = scmp.eq.s32.totalorder %s14, 1
      %p69 = por %p67, %p68
      %p70 = scmp.ne.s32.totalorder %s62, %s65
      %p71 = scmp.eq.s32.totalorder %s14, 0
      %p72 = por %p70, %p71
      %p73 = scmp.ne.s32.totalorder %s62, %s65
      %p74 = scmp.eq.s32.totalorder %s19, 1
      %p75 = por %p73, %p74
      %p76 = scmp.ne.s32.totalorder %s65, %s66
      %p77 = scmp.eq.s32.totalorder %s19, 0
      %p78 = por %p76, %p77
      %p79 = scmp.ne.s32.totalorder %s65, %s66
      %p80 = scmp.eq.s32.totalorder %s20, 1
      %p81 = por %p79, %p80
      %p83 = scmp.ne.s32.totalorder %s66, %s82
      %p84 = scmp.eq.s32.totalorder %s20, 0
      %p85 = por %p83, %p84
      %s86 = ssub.s32 %s22, %s29
      %p87 = scmp.eq.s32.totalorder %s86, 0
      %s89 = sadd.s32 %s88, 1
      %s90 = scalar_select %p87, %s88, %s89
      %p93 = pneg %p87
      %p94 = scmp.eq.s32.totalorder %s14, 1
      %p95 = por %p93, %p94
      %p96 = scmp.ne.s32.totalorder %s88, %s91
      %p97 = scmp.eq.s32.totalorder %s14, 0
      %p98 = por %p96, %p97
      %p99 = scmp.ne.s32.totalorder %s88, %s91
      %p100 = scmp.eq.s32.totalorder %s19, 1
      %p101 = por %p99, %p100
      %p102 = scmp.ne.s32.totalorder %s91, %s92
      %p103 = scmp.eq.s32.totalorder %s19, 0
      %p104 = por %p102, %p103
      %p105 = scmp.ne.s32.totalorder %s91, %s92
      %p106 = scmp.eq.s32.totalorder %s20, 1
      %p107 = por %p105, %p106
      %p109 = scmp.ne.s32.totalorder %s92, %s108
      %p110 = scmp.eq.s32.totalorder %s20, 0
      %p111 = por %p109, %p110
      %s112 = ssub.s32 %s21, %s33
      %p113 = scmp.eq.s32.totalorder %s112, 0
      %s115 = sadd.s32 %s114, 1
      %s116 = scalar_select %p113, %s114, %s115
      %p119 = pneg %p113
      %p120 = scmp.eq.s32.totalorder %s14, 1
      %p121 = por %p119, %p120
      %p122 = scmp.ne.s32.totalorder %s114, %s117
      %p123 = scmp.eq.s32.totalorder %s14, 0
      %p124 = por %p122, %p123
      %p125 = scmp.ne.s32.totalorder %s114, %s117
      %p126 = scmp.eq.s32.totalorder %s19, 1
      %p127 = por %p125, %p126
      %p128 = scmp.ne.s32.totalorder %s117, %s118
      %p129 = scmp.eq.s32.totalorder %s19, 0
      %p130 = por %p128, %p129
      %p131 = scmp.ne.s32.totalorder %s117, %s118
      %p132 = scmp.eq.s32.totalorder %s20, 1
      %p133 = por %p131, %p132
      %p135 = scmp.ne.s32.totalorder %s118, %s134
      %p136 = scmp.eq.s32.totalorder %s20, 0
      %p137 = por %p135, %p136
      %p138 = scmp.le.s32.totalorder 1, %s14
      %p139 = scmp.lt.s32.totalorder %s14, 3
      %p140 = pnand %p138, %p139
      %p141 = pneg %p140
      // Predicated region
      $region9: #{tpu_custom_call.1} parent=5 // pred_check
        _
      $region10: #{tpu_custom_call.1} parent=5 // pred_check_branch
        %143 = sbr.rel (%p140) target = $region12
      $region11: #{tpu_custom_call.1} parent=5 // pred_region
        %s144 = ssub.s32 %s14, 1
        // Predicated region
        $region13: #{tpu_custom_call.1} parent=11 // pred_check
          %p145 = pneg %p52
        $region14: #{tpu_custom_call.1} parent=11 // pred_check_branch
          %147 = sbr.rel (%p145) target = $region16
        $region15: #{tpu_custom_call.1} parent=11 // pred_region
          %s148 = smul.u32 3, %s23
          %150 = vsyncadd [#allocation4], 0
          %s151 = smul.addr %s148, 8
          %s152 = scalar_lea.hbm %s0, %s151
          %s153 = sshll.u32 %s152, 4
          %s154 = int_to_ptr.hbm [resolvable:$true] %s153
          %s155 = sshll.u32 [#allocation3], 4
          %s156 = int_to_ptr.vmem [resolvable:$true] %s155
          %161 = dma.hbm_to_vmem [thread:$0]  %s154, 384, %s156, [#allocation4], 128, 128, 8
        $region16: #{tpu_custom_call.1} parent=11 // pred_fallthru
          _
      $region12: #{tpu_custom_call.1} parent=5 // pred_fallthru
        _
      %p162 = scmp.lt.s32.totalorder %s14, 2
      // Predicated region
      $region17: #{tpu_custom_call.1} parent=5 // pred_check
        %p163 = pneg %p162
      $region18: #{tpu_custom_call.1} parent=5 // pred_check_branch
        %165 = sbr.rel (%p163) target = $region20
      $region19: #{tpu_custom_call.1} parent=5 // pred_region
        // Predicated region
        $region21: #{tpu_custom_call.1} parent=19 // pred_check
          %p166 = pneg %p72
        $region22: #{tpu_custom_call.1} parent=19 // pred_check_branch
          %168 = sbr.rel (%p166) target = $region24
        $region23: #{tpu_custom_call.1} parent=19 // pred_region
          %s169 = sand.u32 %s14, 1
          %s170 = scalar_lea.sflag [#allocation7], %s169
          %s171 = sand.u32 %s62, 1
          %s172 = smul.addr %s171, 256
          %s173 = scalar_lea.vmem [#allocation6], %s172
          %s174 = smul.u32 2, %s22
          %176 = vsyncadd %s170, 0
          %s177 = smul.addr %s174, 8
          %s178 = scalar_lea.hbm %s1, %s177
          %s179 = sshll.u32 %s178, 4
          %s180 = int_to_ptr.hbm [resolvable:$true] %s179
          %s181 = sshll.u32 %s173, 4
          %s182 = int_to_ptr.vmem [resolvable:$true] %s181
          %187 = dma.hbm_to_vmem [thread:$0]  %s180, 4096, %s182, %s170, 512, 256, 16
        $region24: #{tpu_custom_call.1} parent=19 // pred_fallthru
          _
        // Predicated region
        $region25: #{tpu_custom_call.1} parent=19 // pred_check
          %p188 = pneg %p98
        $region26: #{tpu_custom_call.1} parent=19 // pred_check_branch
          %190 = sbr.rel (%p188) target = $region28
        $region27: #{tpu_custom_call.1} parent=19 // pred_region
          %s191 = sand.u32 %s14, 1
          %s192 = scalar_lea.sflag [#allocation7], %s191
          %s193 = sand.u32 %s88, 1
          %s194 = smul.addr %s193, 128
          %s195 = scalar_lea.vmem [#allocation8], %s194
          %s196 = smul.u32 16, %s22
          %198 = vsyncadd %s192, 0
          %s199 = smul.addr %s196, 8
          %s200 = scalar_lea.hbm %s2, %s199
          %s201 = sshll.u32 %s200, 4
          %s202 = int_to_ptr.hbm [resolvable:$true] %s201
          %s203 = sshll.u32 %s195, 4
          %s204 = int_to_ptr.vmem [resolvable:$true] %s203
          %209 = dma.hbm_to_vmem [thread:$0]  %s202, 2048, %s204, %s192, 128, 128, 8
        $region28: #{tpu_custom_call.1} parent=19 // pred_fallthru
          _
      $region20: #{tpu_custom_call.1} parent=5 // pred_fallthru
        _
      %p210 = scmp.le.s32.totalorder 1, %s14
      %p211 = scmp.lt.s32.totalorder %s14, 3
      %p212 = pnand %p210, %p211
      %p213 = pneg %p212
      // Predicated region
      $region29: #{tpu_custom_call.1} parent=5 // pred_check
        _
      $region30: #{tpu_custom_call.1} parent=5 // pred_check_branch
        %215 = sbr.rel (%p212) target = $region32
      $region31: #{tpu_custom_call.1} parent=5 // pred_region
        %s216 = ssub.s32 %s14, 1
        // Predicated region
        $region33: #{tpu_custom_call.1} parent=31 // pred_check
          %p217 = pneg %p52
        $region34: #{tpu_custom_call.1} parent=31 // pred_check_branch
          %219 = sbr.rel (%p217) target = $region36
        $region35: #{tpu_custom_call.1} parent=31 // pred_region
          %221 = dma.done [#allocation4], 384
        $region36: #{tpu_custom_call.1} parent=31 // pred_fallthru
          _
        %s222 = sand.u32 %s19, 1
        %s223 = scalar_lea.sflag [#allocation7], %s222
        %s224 = sand.u32 %s65, 1
        %s225 = smul.addr %s224, 256
        %s226 = scalar_lea.vmem [#allocation6], %s225
        // Predicated region
        $region37: #{tpu_custom_call.1} parent=31 // pred_check
          %p227 = pneg %p78
        $region38: #{tpu_custom_call.1} parent=31 // pred_check_branch
          %229 = sbr.rel (%p227) target = $region40
        $region39: #{tpu_custom_call.1} parent=31 // pred_region
          %231 = dma.done %s223, 4096
        $region40: #{tpu_custom_call.1} parent=31 // pred_fallthru
          _
        %s232 = sand.u32 %s19, 1
        %s233 = scalar_lea.sflag [#allocation7], %s232
        %s234 = sand.u32 %s91, 1
        %s235 = smul.addr %s234, 128
        %s236 = scalar_lea.vmem [#allocation8], %s235
        // Predicated region
        $region41: #{tpu_custom_call.1} parent=31 // pred_check
          %p237 = pneg %p104
        $region42: #{tpu_custom_call.1} parent=31 // pred_check_branch
          %239 = sbr.rel (%p237) target = $region44
        $region43: #{tpu_custom_call.1} parent=31 // pred_region
          %241 = dma.done %s233, 2048
        $region44: #{tpu_custom_call.1} parent=31 // pred_fallthru
          _
        %p242 = pneg %p52
        %p243 = pneg %p49
        %s244 = sand.u32 %s19, 1
        %s245 = scalar_lea.sflag [#allocation7], %s244
        %s246 = sand.u32 %s65, 1
        %s247 = smul.addr %s246, 256
        %s248 = scalar_lea.vmem [#allocation6], %s247
        %p249 = pneg %p78
        %p250 = pneg %p75
        %s251 = sand.u32 %s19, 1
        %s252 = scalar_lea.sflag [#allocation7], %s251
        %s253 = sand.u32 %s91, 1
        %s254 = smul.addr %s253, 128
        %s255 = scalar_lea.vmem [#allocation8], %s254
        %p256 = pneg %p104
        %p257 = pneg %p101
        %p258 = pneg %p130
        %p259 = pneg %p127
        %s260 = smul.u32 3, %s23
        %s261 = smul.u32 2, %s24
        %s262 = smul.u32 16, %s24
        %s263 = smul.u32 3, %s23
        %p264 = scmp.eq.s32.totalorder %s24, 0
        // Predicated region
        $region45: #{tpu_custom_call.1} parent=31 // pred_check
          %p265 = pneg %p264
        $region46: #{tpu_custom_call.1} parent=31 // pred_check_branch
          %267 = sbr.rel (%p265) target = $region48
        $region47: #{tpu_custom_call.1} parent=31 // pred_region
          %268 = vst [vmem:[#allocation2] sm:$0xff] 0.0
          %269 = vst [vmem:[#allocation2 + $0x8] sm:$0xff] 0.0
          %270 = vst [vmem:[#allocation2 + $0x10] sm:$0xff] 0.0
        $region48: #{tpu_custom_call.1} parent=31 // pred_fallthru
          _
        %v271 = vld [vmem:[#allocation3] sm:$0xff]
        %v272 = vld [vmem:[#allocation3 + $0x8] sm:$0xff]
        %v273 = vld [vmem:[#allocation3 + $0x10] sm:$0xff]
        %v274 = vld [vmem:[%s226] sm:$0xff]
        %v275 = vld [vmem:[%s226 + $0x8] sm:$0xff]
        %v276 = vld [vmem:[%s226 + $0x10] sm:$0xff]
        %v277 = vld [vmem:[%s226 + $0x18] sm:$0xff]
        %v278 = vld [vmem:[%s226 + $0x20] sm:$0xff]
        %v279 = vld [vmem:[%s226 + $0x28] sm:$0xff]
        %v280 = vld [vmem:[%s226 + $0x30] sm:$0xff]
        %v281 = vld [vmem:[%s226 + $0x38] sm:$0xff]
        %v282 = vld [vmem:[%s226 + $0x40] sm:$0xff]
        %v283 = vld [vmem:[%s226 + $0x48] sm:$0xff]
        %v284 = vld [vmem:[%s226 + $0x50] sm:$0xff]
        %v285 = vld [vmem:[%s226 + $0x58] sm:$0xff]
        %v286 = vld [vmem:[%s226 + $0x60] sm:$0xff]
        %v287 = vld [vmem:[%s226 + $0x68] sm:$0xff]
        %v288 = vld [vmem:[%s226 + $0x70] sm:$0xff]
        %v289 = vld [vmem:[%s226 + $0x78] sm:$0xff]
        %v290 = vld [vmem:[%s226 + $0x80] sm:$0xff]
        %v291 = vld [vmem:[%s226 + $0x88] sm:$0xff]
        %v292 = vld [vmem:[%s226 + $0x90] sm:$0xff]
        %v293 = vld [vmem:[%s226 + $0x98] sm:$0xff]
        %v294 = vld [vmem:[%s226 + $0xa0] sm:$0xff]
        %v295 = vld [vmem:[%s226 + $0xa8] sm:$0xff]
        %v296 = vld [vmem:[%s226 + $0xb0] sm:$0xff]
        %v297 = vld [vmem:[%s226 + $0xb8] sm:$0xff]
        %v298 = vld [vmem:[%s226 + $0xc0] sm:$0xff]
        %v299 = vld [vmem:[%s226 + $0xc8] sm:$0xff]
        %v300 = vld [vmem:[%s226 + $0xd0] sm:$0xff]
        %v301 = vld [vmem:[%s226 + $0xd8] sm:$0xff]
        %v302 = vld [vmem:[%s226 + $0xe0] sm:$0xff]
        %v303 = vld [vmem:[%s226 + $0xe8] sm:$0xff]
        %v304 = vld [vmem:[%s226 + $0xf0] sm:$0xff]
        %v305 = vld [vmem:[%s226 + $0xf8] sm:$0xff]
        %306 = vmatpush.msra.mxu0 %v304
        %307 = vmatpush.msra.mxu0 %v302
        %308 = vmatpush.msra.mxu0 %v300
        %309 = vmatpush.msra.mxu0 %v298
        %310 = vmatpush.msra.mxu0 %v296
        %311 = vmatpush.msra.mxu0 %v294
        %312 = vmatpush.msra.mxu0 %v292
        %313 = vmatpush.msra.mxu0 %v290
        %314 = vmatpush.msra.mxu0 %v288
        %315 = vmatpush.msra.mxu0 %v286
        %316 = vmatpush.msra.mxu0 %v284
        %317 = vmatpush.msra.mxu0 %v282
        %318 = vmatpush.msra.mxu0 %v280
        %319 = vmatpush.msra.mxu0 %v278
        %320 = vmatpush.msra.mxu0 %v276
        %321 = vmatpush.msra.mxu0 %v274
        %322 = vmatmul.f32.gmra.mxu0 %v271
        %v323 = vpop.f32.mrf.mxu0
        %v324 = vadd.f32 0.0, %v323
        %325 = vmatmul.f32.gmra.mxu0 %v272
        %v326 = vpop.f32.mrf.mxu0
        %v327 = vadd.f32 0.0, %v326
        %328 = vmatmul.f32.gmra.mxu0 %v273
        %v329 = vpop.f32.mrf.mxu0
        %v330 = vadd.f32 0.0, %v329
        %331 = vdwg.mxu0
        %332 = vmatpush.msra.mxu0 %v305
        %333 = vmatpush.msra.mxu0 %v303
        %334 = vmatpush.msra.mxu0 %v301
        %335 = vmatpush.msra.mxu0 %v299
        %336 = vmatpush.msra.mxu0 %v297
        %337 = vmatpush.msra.mxu0 %v295
        %338 = vmatpush.msra.mxu0 %v293
        %339 = vmatpush.msra.mxu0 %v291
        %340 = vmatpush.msra.mxu0 %v289
        %341 = vmatpush.msra.mxu0 %v287
        %342 = vmatpush.msra.mxu0 %v285
        %343 = vmatpush.msra.mxu0 %v283
        %344 = vmatpush.msra.mxu0 %v281
        %345 = vmatpush.msra.mxu0 %v279
        %346 = vmatpush.msra.mxu0 %v277
        %347 = vmatpush.msra.mxu0 %v275
        %348 = vmatmul.f32.gmra.mxu0 %v271
        %v349 = vpop.f32.mrf.mxu0
        %v350 = vadd.f32 0.0, %v349
        %351 = vmatmul.f32.gmra.mxu0 %v272
        %v352 = vpop.f32.mrf.mxu0
        %v353 = vadd.f32 0.0, %v352
        %354 = vmatmul.f32.gmra.mxu0 %v273
        %v355 = vpop.f32.mrf.mxu0
        %v356 = vadd.f32 0.0, %v355
        %357 = vdwg.mxu0
        %v358 = vxor.u32 %v324, 2147483648
        %v359 = vxor.u32 %v327, 2147483648
        %v360 = vxor.u32 %v330, 2147483648
        %v361 = vmul.f32 %v358, 1.442695
        %v362 = vpow.pop %v361
        %v363 = vmul.f32 %v359, 1.442695
        %v364 = vpow.pop %v363
        %v365 = vmul.f32 %v360, 1.442695
        %v366 = vpow.pop %v365
        %v367 = vadd.f32 %v362, 1.0
        %v368 = vadd.f32 %v364, 1.0
        %v369 = vadd.f32 %v366, 1.0
        %v370 = vrcp.pop %v367
        %v371 = vmul.f32 %v367, %v370
        %v372 = vsub.f32 1.0, %v371
        %v373 = vmul.f32 %v370, %v372
        %v374 = vadd.f32 %v370, %v373
        %vm375 = vweird.f32 %v367
        %vm376 = vweird.f32 %v370
        %vm377 = vmor %vm375, %vm376
        %v378 = vsel %vm377, %v370, %v374
        %v379 = vand.u32 2147483647, %v367
        %vm380 = vcmp.eq.f32.partialorder %v379, 8.507059e+37
        %v381 = vand.u32 %v367, 2147483648
        %v382 = vor.u32 1.1754944e-38, %v381
        %v383 = vsel %vm380, %v382, %v378
        %v384 = vmul.f32 1.0, %v383
        %v385 = vrcp.pop %v368
        %v386 = vmul.f32 %v368, %v385
        %v387 = vsub.f32 1.0, %v386
        %v388 = vmul.f32 %v385, %v387
        %v389 = vadd.f32 %v385, %v388
        %vm390 = vweird.f32 %v368
        %vm391 = vweird.f32 %v385
        %vm392 = vmor %vm390, %vm391
        %v393 = vsel %vm392, %v385, %v389
        %v394 = vand.u32 2147483647, %v368
        %vm395 = vcmp.eq.f32.partialorder %v394, 8.507059e+37
        %v396 = vand.u32 %v368, 2147483648
        %v397 = vor.u32 1.1754944e-38, %v396
        %v398 = vsel %vm395, %v397, %v393
        %v399 = vmul.f32 1.0, %v398
        %v400 = vrcp.pop %v369
        %v401 = vmul.f32 %v369, %v400
        %v402 = vsub.f32 1.0, %v401
        %v403 = vmul.f32 %v400, %v402
        %v404 = vadd.f32 %v400, %v403
        %vm405 = vweird.f32 %v369
        %vm406 = vweird.f32 %v400
        %vm407 = vmor %vm405, %vm406
        %v408 = vsel %vm407, %v400, %v404
        %v409 = vand.u32 2147483647, %v369
        %vm410 = vcmp.eq.f32.partialorder %v409, 8.507059e+37
        %v411 = vand.u32 %v369, 2147483648
        %v412 = vor.u32 1.1754944e-38, %v411
        %v413 = vsel %vm410, %v412, %v408
        %v414 = vmul.f32 1.0, %v413
        %v415 = vmul.f32 %v324, %v384
        %v416 = vmul.f32 %v327, %v399
        %v417 = vmul.f32 %v330, %v414
        %v418 = vmul.f32 %v415, %v350
        %v419 = vmul.f32 %v416, %v353
        %v420 = vmul.f32 %v417, %v356
        %v421 = vld [vmem:[#allocation2] sm:$0xff]
        %v422 = vld [vmem:[#allocation2 + $0x8] sm:$0xff]
        %v423 = vld [vmem:[#allocation2 + $0x10] sm:$0xff]
        %v424 = vld [vmem:[%s236] sm:$0xff]
        %v425 = vld [vmem:[%s236 + $0x8] sm:$0xff]
        %v426 = vld [vmem:[%s236 + $0x10] sm:$0xff]
        %v427 = vld [vmem:[%s236 + $0x18] sm:$0xff]
        %v428 = vld [vmem:[%s236 + $0x20] sm:$0xff]
        %v429 = vld [vmem:[%s236 + $0x28] sm:$0xff]
        %v430 = vld [vmem:[%s236 + $0x30] sm:$0xff]
        %v431 = vld [vmem:[%s236 + $0x38] sm:$0xff]
        %v432 = vld [vmem:[%s236 + $0x40] sm:$0xff]
        %v433 = vld [vmem:[%s236 + $0x48] sm:$0xff]
        %v434 = vld [vmem:[%s236 + $0x50] sm:$0xff]
        %v435 = vld [vmem:[%s236 + $0x58] sm:$0xff]
        %v436 = vld [vmem:[%s236 + $0x60] sm:$0xff]
        %v437 = vld [vmem:[%s236 + $0x68] sm:$0xff]
        %v438 = vld [vmem:[%s236 + $0x70] sm:$0xff]
        %v439 = vld [vmem:[%s236 + $0x78] sm:$0xff]
        %440 = vmatpush.msra.mxu0 %v439
        %441 = vmatpush.msra.mxu0 %v438
        %442 = vmatpush.msra.mxu0 %v437
        %443 = vmatpush.msra.mxu0 %v436
        %444 = vmatpush.msra.mxu0 %v435
        %445 = vmatpush.msra.mxu0 %v434
        %446 = vmatpush.msra.mxu0 %v433
        %447 = vmatpush.msra.mxu0 %v432
        %448 = vmatpush.msra.mxu0 %v431
        %449 = vmatpush.msra.mxu0 %v430
        %450 = vmatpush.msra.mxu0 %v429
        %451 = vmatpush.msra.mxu0 %v428
        %452 = vmatpush.msra.mxu0 %v427
        %453 = vmatpush.msra.mxu0 %v426
        %454 = vmatpush.msra.mxu0 %v425
        %455 = vmatpush.msra.mxu0 %v424
        %456 = vmatmul.f32.gmra.mxu0 %v418
        %v457 = vpop.f32.mrf.mxu0
        %v458 = vadd.f32 0.0, %v457
        %459 = vmatmul.f32.gmra.mxu0 %v419
        %v460 = vpop.f32.mrf.mxu0
        %v461 = vadd.f32 0.0, %v460
        %462 = vmatmul.f32.gmra.mxu0 %v420
        %v463 = vpop.f32.mrf.mxu0
        %v464 = vadd.f32 0.0, %v463
        %465 = vdwg.mxu0
        %v466 = vadd.f32 %v421, %v458
        %v467 = vadd.f32 %v422, %v461
        %v468 = vadd.f32 %v423, %v464
        %469 = vst [vmem:[#allocation2] sm:$0xff] %v466
        %470 = vst [vmem:[#allocation2 + $0x8] sm:$0xff] %v467
        %471 = vst [vmem:[#allocation2 + $0x10] sm:$0xff] %v468
        %p472 = scmp.eq.s32.totalorder %s24, 1
        // Predicated region
        $region49: #{tpu_custom_call.1} parent=31 // pred_check
          %p473 = pneg %p472
        $region50: #{tpu_custom_call.1} parent=31 // pred_check_branch
          %475 = sbr.rel (%p473) target = $region52
        $region51: #{tpu_custom_call.1} parent=31 // pred_region
          %v476 = vld [vmem:[#allocation2] sm:$0xff]
          %v477 = vld [vmem:[#allocation2 + $0x8] sm:$0xff]
          %v478 = vld [vmem:[#allocation2 + $0x10] sm:$0xff]
          %479 = vst [vmem:[#allocation9] sm:$0xff] %v476
          %480 = vst [vmem:[#allocation9 + $0x8] sm:$0xff] %v477
          %481 = vst [vmem:[#allocation9 + $0x10] sm:$0xff] %v478
        $region52: #{tpu_custom_call.1} parent=31 // pred_fallthru
          _
        // Predicated region
        $region53: #{tpu_custom_call.1} parent=31 // pred_check
          %p482 = pneg %p127
        $region54: #{tpu_custom_call.1} parent=31 // pred_check_branch
          %484 = sbr.rel (%p482) target = $region56
        $region55: #{tpu_custom_call.1} parent=31 // pred_region
          %s485 = smul.u32 3, %s23
          %487 = vsyncadd [#allocation5], 0
          %s488 = smul.addr %s485, 8
          %s489 = scalar_lea.hbm %s3, %s488
          %s490 = sshll.u32 [#allocation9], 4
          %s491 = int_to_ptr.vmem [resolvable:$true] %s490
          %s492 = sshll.u32 %s489, 4
          %s493 = int_to_ptr.hbm [resolvable:$true] %s492
          %498 = dma.vmem_to_hbm [thread:$0]  %s491, 384, %s493, [#allocation5], 128, 128, 8
        $region56: #{tpu_custom_call.1} parent=31 // pred_fallthru
          _
        // Predicated region
        $region57: #{tpu_custom_call.1} parent=31 // pred_check
          %p499 = pneg %p127
        $region58: #{tpu_custom_call.1} parent=31 // pred_check_branch
          %501 = sbr.rel (%p499) target = $region60
        $region59: #{tpu_custom_call.1} parent=31 // pred_region
          %503 = dma.done [#allocation5], 384
        $region60: #{tpu_custom_call.1} parent=31 // pred_fallthru
          _
      $region32: #{tpu_custom_call.1} parent=5 // pred_fallthru
        _
      %p504 = scmp.le.s32.totalorder 2, %s14
      // Predicated region
      $region61: #{tpu_custom_call.1} parent=5 // pred_check
        %p505 = pneg %p504
      $region62: #{tpu_custom_call.1} parent=5 // pred_check_branch
        %507 = sbr.rel (%p505) target = $region64
      $region63: #{tpu_custom_call.1} parent=5 // pred_region
        %s508 = ssub.s32 %s14, 2
      $region64: #{tpu_custom_call.1} parent=5 // pred_fallthru
        _
    $region6: #{tpu_custom_call.1} parent=1 // loop_footer
      %s18 = sadd.s32 1, %s14
    $region7: #{tpu_custom_call.1} parent=1 // loop_footer_branch
      %13 = sbr.rel target = $region3
    $region8: #{tpu_custom_call.1} parent=1 // loop_exit
      _
    %509 = vsyncpa [#allocation4], 1
    %s510 = scalar_lea.sflag [#allocation4], 1
    %511 = vsyncpa %s510, 1
    %512 = vsyncpa [#allocation7], 1
    %s513 = scalar_lea.sflag [#allocation7], 1
    %514 = vsyncpa %s513, 1
    %515 = vsyncpa [#allocation5], 1
    %s516 = scalar_lea.sflag [#allocation5], 1
    %517 = vsyncpa %s516, 1

</llo_original>
